<compile_context>
chip_gen: v7x
topology: tpu7x:2x2x1
jax: 0.10.0
libtpu: 0.0.40
codegen_flags: <defaults>
</compile_context>

<pallas_src>
import jax
import jax.numpy as jnp
from jax.experimental import pallas as pl
from jax.experimental.pallas import tpu as pltpu

NEG_SLOPE = 0.01          # nn.LeakyReLU default
LANE = 128                # TPU lane width; batch tile is a multiple of this
DEFAULT_BLOCK_B = 1024    # max batch columns per grid step


def _leaky_relu(x):
    # max(x, a*x) = 2 VALU ops/vreg (vs where = cmp+select+mul = 3)
    return jnp.maximum(x, NEG_SLOPE * x)


def mlp_kernel(x_ref, w1_ref, w2_ref, w3_ref, b_ref, o_ref):
    """One batch tile of the fused MLP, batch on the lane axis.

    x_ref : (k_pad, TB) f32   transposed input; row `num_obs` is all-ones
                              (carries the layer-1 bias through the MXU)
    w1_ref: (H, k_pad)  bf16  layer-1 weight (PyTorch (out,in) layout),
                              column `num_obs` holds b1
    w2_ref: (H, H)      bf16  layer-2 weight (out,in)
    w3_ref: (na_pad, H) bf16  layer-3 weight (out,in), zero-padded rows
    b_ref : (H, 2)      f32   col 0 = b2, col 1[:num_act] = b3 (zero pad)
    o_ref : (na_pad, TB) f32  lane-dense output tile
    """
    x = x_ref[...].astype(jnp.bfloat16)                 # (k_pad, TB)

    # ---- Layer 1 (MXU): bias folded in via the ones row / bias column.
    h1 = jnp.dot(w1_ref[...], x, preferred_element_type=jnp.float32)
    h1 = _leaky_relu(h1).astype(jnp.bfloat16)           # (H, TB)

    # ---- Layer 2 (MXU) + f32 bias (lane broadcast) + LeakyReLU.
    h2 = jnp.dot(w2_ref[...], h1, preferred_element_type=jnp.float32)
    h2 = _leaky_relu(h2 + b_ref[:, 0:1]).astype(jnp.bfloat16)

    # ---- Layer 3 (MXU) + f32 bias; lane-dense (na_pad, TB) store.
    na = w3_ref.shape[0]
    out = jnp.dot(w3_ref[...], h2, preferred_element_type=jnp.float32)
    o_ref[...] = (out + b_ref[0:na, 1:2]).astype(o_ref.dtype)


def net_forward(x, kparams, *, block_b=DEFAULT_BLOCK_B):
    """x: (B, num_obs) f32 -> (B, num_act) f32."""
    w1t = kparams["w1t"]          # (H, k_pad)  bf16
    w2t = kparams["w2t"]          # (H, H)      bf16
    w3t = kparams["w3t"]          # (na_pad, H) bf16
    b_pack = kparams["b_pack"]    # (H, 2)      f32
    num_act = kparams["num_act"]

    B, K = x.shape
    k_pad = w1t.shape[1]
    na_pad = w3t.shape[0]

    # Balanced batch tiles, multiples of 128 lanes; >= 2 grid steps when the
    # batch is big enough so both v7x TensorCores get work.
    n_tiles = max(pl.cdiv(B, block_b), 2 if B > LANE else 1)
    tb = pl.cdiv(pl.cdiv(B, n_tiles), LANE) * LANE
    b_pad = n_tiles * tb

    # Transposed, lane-dense input with an appended ones-row (layer-1 bias).
    x_aug = jnp.zeros((k_pad, b_pad), jnp.float32)
    x_aug = x_aug.at[:K, :B].set(x.T)
    x_aug = x_aug.at[K, :].set(1.0)

    out = pl.pallas_call(
        mlp_kernel,
        out_shape=jax.ShapeDtypeStruct((na_pad, b_pad), jnp.float32),
        grid_spec=pltpu.PrefetchScalarGridSpec(
            num_scalar_prefetch=0,
            grid=(n_tiles,),
            in_specs=[
                # x (and the output) are pipelined over the batch/lane axis ...
                pl.BlockSpec((k_pad, tb), lambda i: (0, i)),
                # ... weights & biases have constant block indices -> DMA'd
                # once, VMEM-resident across all grid steps.
                pl.BlockSpec(w1t.shape, lambda i: (0, 0)),
                pl.BlockSpec(w2t.shape, lambda i: (0, 0)),
                pl.BlockSpec(w3t.shape, lambda i: (0, 0)),
                pl.BlockSpec(b_pack.shape, lambda i: (0, 0)),
            ],
            out_specs=pl.BlockSpec((na_pad, tb), lambda i: (0, i)),
        ),
        compiler_params=pltpu.CompilerParams(
            dimension_semantics=("parallel",)),
    )(x_aug, w1t, w2t, w3t, b_pack)

    # (na_pad, b_pad) -> (B, num_act); padded rows/cols are exact zeros.
    return out[:num_act, :B].T


def init_params(key, num_obs=4, num_act=2, hidden=256):
    """PyTorch nn.Linear default init: U(-1/sqrt(fan_in), +1/sqrt(fan_in))."""
    keys = jax.random.split(key, 6)

    def linear(kw, kb, fan_in, fan_out):
        bound = 1.0 / jnp.sqrt(jnp.float32(fan_in))
        # weight stored as (in, out) == PyTorch (out, in) transposed
        w = jax.random.uniform(kw, (fan_in, fan_out), jnp.float32, -bound, bound)
        b = jax.random.uniform(kb, (fan_out,), jnp.float32, -bound, bound)
        return w, b

    w1, b1 = linear(keys[0], keys[1], num_obs, hidden)
    w2, b2 = linear(keys[2], keys[3], hidden, hidden)
    w3, b3 = linear(keys[4], keys[5], hidden, num_act)
    return {"w1": w1, "b1": b1, "w2": w2, "b2": b2, "w3": w3, "b3": b3}


def prepare_kernel_params(raw, num_act):
    """Kernel-ready params for the transposed (batch-on-lanes) dataflow."""
    w1 = raw["w1"]                            # (num_obs, H)
    num_obs, hidden = w1.shape
    k_pad = pl.cdiv(num_obs + 1, 8) * 8       # +1 for the folded bias row
    na_pad = pl.cdiv(num_act, 8) * 8

    # Layer-1 weight in (out, in) layout, padded; bias b1 in column `num_obs`.
    w1t = jnp.zeros((hidden, k_pad), jnp.float32)
    w1t = w1t.at[:, :num_obs].set(w1.T)
    w1t = w1t.at[:, num_obs].set(raw["b1"])

    w2t = raw["w2"].T                         # (out, in) = (H, H)
    w3t = jnp.zeros((na_pad, hidden), jnp.float32).at[:num_act, :].set(raw["w3"].T)

    b_pack = jnp.zeros((hidden, 2), jnp.float32)
    b_pack = b_pack.at[:, 0].set(raw["b2"])
    b_pack = b_pack.at[:num_act, 1].set(raw["b3"])

    return {
        "w1t": w1t.astype(jnp.bfloat16),
        "w2t": w2t.astype(jnp.bfloat16),
        "w3t": w3t.astype(jnp.bfloat16),
        "b_pack": b_pack,                     # f32 biases (VPU adds in f32)
        "num_obs": num_obs,
        "num_act": num_act,
    }


def reference_forward_f32(x, raw):
    h1 = _leaky_relu(x @ raw["w1"] + raw["b1"])
    h2 = _leaky_relu(h1 @ raw["w2"] + raw["b2"])
    return h2 @ raw["w3"] + raw["b3"]


def reference_forward_bf16(x, raw):
    """Same math as the kernel: bf16 MXU operands, f32 accumulation, f32
    bias/activation (layer-1 bias effectively carried at bf16 precision)."""
    bf, f32 = jnp.bfloat16, jnp.float32
    h1 = jnp.dot(x.astype(bf), raw["w1"].astype(bf), preferred_element_type=f32)
    h1 = _leaky_relu(h1 + raw["b1"].astype(bf).astype(f32))
    h2 = jnp.dot(h1.astype(bf), raw["w2"].astype(bf), preferred_element_type=f32)
    h2 = _leaky_relu(h2 + raw["b2"])
    return jnp.dot(h2.astype(bf), raw["w3"].astype(bf),
                   preferred_element_type=f32) + raw["b3"]


if __name__ == "__main__":
    key = jax.random.PRNGKey(0)
    kp, kx1, kx2 = jax.random.split(key, 3)

    num_obs, num_act, hidden = 4, 2, 256
    raw = init_params(kp, num_obs=num_obs, num_act=num_act, hidden=hidden)
    kparams = prepare_kernel_params(raw, num_act)

    # Small demo batch (single grid step).
    x_small = jax.random.normal(kx1, (8, num_obs), jnp.float32)
    out_small = jax.block_until_ready(net_forward(x_small, kparams))
    assert out_small.shape == (8, num_act)
    assert jnp.allclose(out_small, reference_forward_bf16(x_small, raw),
                        atol=2e-3, rtol=2e-3), "mismatch vs bf16 reference"
    assert jnp.allclose(out_small, reference_forward_f32(x_small, raw),
                        atol=5e-2, rtol=5e-2), "mismatch vs f32 reference"

    # Larger batch exercising the multi-tile / balanced-tiling path
    # (640 -> 2 tiles of 384 lanes each).
    x_big = jax.random.normal(kx2, (640, num_obs), jnp.float32)
    out_big = jax.block_until_ready(net_forward(x_big, kparams))
    assert out_big.shape == (640, num_act)
    assert jnp.allclose(out_big, reference_forward_bf16(x_big, raw),
                        atol=2e-3, rtol=2e-3), "mismatch vs bf16 reference (batched)"

    print("KERNEL_OK")
</pallas_src>

<mosaic_0001>
module attributes {stable_mosaic.version = 11 : i64} {
  func.func @mlp_kernel(%arg0: i32, %arg1: memref<8x128xf32, #tpu.memory_space<vmem>>, %arg2: memref<256x8xbf16, #tpu.memory_space<vmem>>, %arg3: memref<256x256xbf16, #tpu.memory_space<vmem>>, %arg4: memref<8x256xbf16, #tpu.memory_space<vmem>>, %arg5: memref<256x2xf32, #tpu.memory_space<vmem>>, %arg6: memref<8x128xf32, #tpu.memory_space<vmem>>) attributes {dimension_semantics = [#tpu.dimension_semantics<parallel>], iteration_bounds = array<i64: 1>, scalar_prefetch = 0 : i64, scratch_operands = 0 : i64, tpu.core_type = #tpu.core_type<tc>, window_params = [{transform_indices = @transform_0, window_bounds = array<i64: 8, 128>}, {pipeline_mode = #tpu.pipeline_mode<synchronous>, transform_indices = @transform_1, window_bounds = array<i64: 256, 8>}, {pipeline_mode = #tpu.pipeline_mode<synchronous>, transform_indices = @transform_2, window_bounds = array<i64: 256, 256>}, {pipeline_mode = #tpu.pipeline_mode<synchronous>, transform_indices = @transform_3, window_bounds = array<i64: 8, 256>}, {pipeline_mode = #tpu.pipeline_mode<synchronous>, transform_indices = @transform_4, window_bounds = array<i64: 256, 2>}, {transform_indices = @transform_5, window_bounds = array<i64: 8, 128>}]} {
    %c0 = arith.constant 0 : index
    %c0_0 = arith.constant 0 : index
    %0 = vector.load %arg1[%c0, %c0_0] : memref<8x128xf32, #tpu.memory_space<vmem>>, vector<8x128xf32>
    %1 = arith.truncf %0 : vector<8x128xf32> to vector<8x128xbf16>
    %c0_1 = arith.constant 0 : index
    %c0_2 = arith.constant 0 : index
    %2 = vector.load %arg2[%c0_1, %c0_2] : memref<256x8xbf16, #tpu.memory_space<vmem>>, vector<256x8xbf16>
    %cst = arith.constant dense<0.000000e+00> : vector<256x128xf32>
    %3 = tpu.matmul %2, %1, %cst {dimension_numbers = #tpu.dot_dimension_numbers<[1], [0], [0], [1], [0, 0, 1, 1], [], []>} : vector<256x8xbf16>, vector<8x128xbf16>, vector<256x128xf32> -> vector<256x128xf32>
    %cst_3 = arith.constant 0.00999999977 : f32
    %4 = vector.broadcast %cst_3 : f32 to vector<256x128xf32>
    %5 = arith.mulf %4, %3 : vector<256x128xf32>
    %6 = arith.maximumf %3, %5 : vector<256x128xf32>
    %7 = arith.truncf %6 : vector<256x128xf32> to vector<256x128xbf16>
    %c0_4 = arith.constant 0 : index
    %c0_5 = arith.constant 0 : index
    %8 = vector.load %arg3[%c0_4, %c0_5] : memref<256x256xbf16, #tpu.memory_space<vmem>>, vector<256x256xbf16>
    %cst_6 = arith.constant dense<0.000000e+00> : vector<256x128xf32>
    %9 = tpu.matmul %8, %7, %cst_6 {dimension_numbers = #tpu.dot_dimension_numbers<[1], [0], [0], [1], [0, 0, 1, 1], [], []>} : vector<256x256xbf16>, vector<256x128xbf16>, vector<256x128xf32> -> vector<256x128xf32>
    %c0_7 = arith.constant 0 : index
    %c0_8 = arith.constant 0 : index
    %10 = vector.load %arg5[%c0_7, %c0_8] : memref<256x2xf32, #tpu.memory_space<vmem>>, vector<256x1xf32>
    %11 = vector.broadcast %10 : vector<256x1xf32> to vector<256x128xf32>
    %12 = arith.addf %9, %11 : vector<256x128xf32>
    %cst_9 = arith.constant 0.00999999977 : f32
    %13 = vector.broadcast %cst_9 : f32 to vector<256x128xf32>
    %14 = arith.mulf %13, %12 : vector<256x128xf32>
    %15 = arith.maximumf %12, %14 : vector<256x128xf32>
    %16 = arith.truncf %15 : vector<256x128xf32> to vector<256x128xbf16>
    %c0_10 = arith.constant 0 : index
    %c0_11 = arith.constant 0 : index
    %17 = vector.load %arg4[%c0_10, %c0_11] : memref<8x256xbf16, #tpu.memory_space<vmem>>, vector<8x256xbf16>
    %cst_12 = arith.constant dense<0.000000e+00> : vector<8x128xf32>
    %18 = tpu.matmul %17, %16, %cst_12 {dimension_numbers = #tpu.dot_dimension_numbers<[1], [0], [0], [1], [0, 0, 1, 1], [], []>} : vector<8x256xbf16>, vector<256x128xbf16>, vector<8x128xf32> -> vector<8x128xf32>
    %c0_13 = arith.constant 0 : index
    %c1 = arith.constant 1 : index
    %19 = vector.load %arg5[%c0_13, %c1] : memref<256x2xf32, #tpu.memory_space<vmem>>, vector<8x1xf32>
    %20 = vector.broadcast %19 : vector<8x1xf32> to vector<8x128xf32>
    %21 = arith.addf %18, %20 : vector<8x128xf32>
    %c0_14 = arith.constant 0 : index
    %c0_15 = arith.constant 0 : index
    %22 = vector.load %arg6[%c0_14, %c0_15] : memref<8x128xf32, #tpu.memory_space<vmem>>, vector<8x128xf32>
    tpu.vector_store %arg6[%c0_14, %c0_15], %21 {strides = array<i32>} : memref<8x128xf32, #tpu.memory_space<vmem>>, vector<8x128xf32>,
    return
  }
  func.func @transform_0(%arg0: i32) -> (i32, i32) {
    %c0_i32 = arith.constant 0 : i32
    %c0_i32_0 = arith.constant 0 : i32
    return %c0_i32, %arg0 : i32, i32
  }
  func.func @transform_1(%arg0: i32) -> (i32, i32) {
    %c0_i32 = arith.constant 0 : i32
    %c0_i32_0 = arith.constant 0 : i32
    %c0_i32_1 = arith.constant 0 : i32
    return %c0_i32, %c0_i32_0 : i32, i32
  }
  func.func @transform_2(%arg0: i32) -> (i32, i32) {
    %c0_i32 = arith.constant 0 : i32
    %c0_i32_0 = arith.constant 0 : i32
    %c0_i32_1 = arith.constant 0 : i32
    return %c0_i32, %c0_i32_0 : i32, i32
  }
  func.func @transform_3(%arg0: i32) -> (i32, i32) {
    %c0_i32 = arith.constant 0 : i32
    %c0_i32_0 = arith.constant 0 : i32
    %c0_i32_1 = arith.constant 0 : i32
    return %c0_i32, %c0_i32_0 : i32, i32
  }
  func.func @transform_4(%arg0: i32) -> (i32, i32) {
    %c0_i32 = arith.constant 0 : i32
    %c0_i32_0 = arith.constant 0 : i32
    %c0_i32_1 = arith.constant 0 : i32
    return %c0_i32, %c0_i32_0 : i32, i32
  }
  func.func @transform_5(%arg0: i32) -> (i32, i32) {
    %c0_i32 = arith.constant 0 : i32
    %c0_i32_0 = arith.constant 0 : i32
    return %c0_i32, %arg0 : i32, i32
  }
}

</mosaic_0001>

<llo_original>
// kernel: tpu_custom_call.1
$region0: #{tpu_custom_call.1}
  #allocation0 [shape = 'u32[]', space=smem, size = 0x4, offset = 0x4, fixed_abs, tag = 'smem constant byte address 0x4 - core index']
  #allocation1 [shape = 'u32[144,128]{1,0:T(1,128)}', space=vmem, size = 0x12000, scoped, tag = 'internal scratch']
  %s0 = inlined_call_operand.vmem [shape: f32[8,128], index: 0, kind: input, shape index: {}]
  %s1 = inlined_call_operand.vmem [shape: bf16[256,8], index: 1, kind: input, shape index: {}]
  %s2 = inlined_call_operand.vmem [shape: bf16[256,256], index: 2, kind: input, shape index: {}]
  %s3 = inlined_call_operand.vmem [shape: bf16[8,256], index: 3, kind: input, shape index: {}]
  %s4 = inlined_call_operand.vmem [shape: f32[256,2], index: 4, kind: input, shape index: {}]
  %s5 = inlined_call_operand.hbm [shape: f32[8,128], index: 5, kind: output, shape index: {}]
  %s6 = sld [smem:[#allocation0]]
  $region30: #{tpu_custom_call.1} parent=0
    _
  %s8 = ssub.s32 1, %s6
  %s9 = scalar_select 0, %s8, %s6
  $region1: #{tpu_custom_call.1} parent=0
    #allocation2 [shape = 'u8[4096]{0}', space=vmem, size = 0x1000, scoped, tag = 'output window, operand 0, single buffered']
    #allocation3 [shape = 's32[1]{0}', space=sflag, size = 0x4, scoped, tag = 'scoped memory for tpu_custom_call.1']
    %10 = vsyncpa [#allocation3], 0
    // Predicated region
    $region2: #{tpu_custom_call.1} parent=1 // pred_check
      _
    $region3: #{tpu_custom_call.1} parent=1 // pred_check_branch
      %12 = sbr.rel (0) target = $region5
    $region4: #{tpu_custom_call.1} parent=1 // pred_region
      _
    $region5: #{tpu_custom_call.1} parent=1 // pred_fallthru
      _
    // Predicated region
    $region6: #{tpu_custom_call.1} parent=1 // pred_check
      _
    $region7: #{tpu_custom_call.1} parent=1 // pred_check_branch
      %14 = sbr.rel (0) target = $region9
    $region8: #{tpu_custom_call.1} parent=1 // pred_region
      _
    $region9: #{tpu_custom_call.1} parent=1 // pred_fallthru
      _
    // Predicated region
    $region10: #{tpu_custom_call.1} parent=1 // pred_check
      _
    $region11: #{tpu_custom_call.1} parent=1 // pred_check_branch
      %16 = sbr.rel (0) target = $region13
    $region12: #{tpu_custom_call.1} parent=1 // pred_region
      _
    $region13: #{tpu_custom_call.1} parent=1 // pred_fallthru
      _
    // Predicated region
    $region14: #{tpu_custom_call.1} parent=1 // pred_check
      _
    $region15: #{tpu_custom_call.1} parent=1 // pred_check_branch
      %18 = sbr.rel (0) target = $region17
    $region16: #{tpu_custom_call.1} parent=1 // pred_region
      _
    $region17: #{tpu_custom_call.1} parent=1 // pred_fallthru
      _
    // Predicated region
    $region18: #{tpu_custom_call.1} parent=1 // pred_check
      _
    $region19: #{tpu_custom_call.1} parent=1 // pred_check_branch
      %20 = sbr.rel (0) target = $region21
    $region20: #{tpu_custom_call.1} parent=1 // pred_region
      _
    $region21: #{tpu_custom_call.1} parent=1 // pred_fallthru
      _
    %v22 = vld [vmem:[%s0] sm:$0xff]
    %v23 = vpack.c.bf16 %v22, %v22
    %v24 = vld [vmem:[%s1] sm:$0xf]
    %v25 = vld [vmem:[%s1 + $0x4] sm:$0xf]
    %v26 = vld [vmem:[%s1 + $0x8] sm:$0xf]
    %v27 = vld [vmem:[%s1 + $0xc] sm:$0xf]
    %v28 = vld [vmem:[%s1 + $0x10] sm:$0xf]
    %v29 = vld [vmem:[%s1 + $0x14] sm:$0xf]
    %v30 = vld [vmem:[%s1 + $0x18] sm:$0xf]
    %v31 = vld [vmem:[%s1 + $0x1c] sm:$0xf]
    %v32 = vld [vmem:[%s1 + $0x20] sm:$0xf]
    %v33 = vld [vmem:[%s1 + $0x24] sm:$0xf]
    %v34 = vld [vmem:[%s1 + $0x28] sm:$0xf]
    %v35 = vld [vmem:[%s1 + $0x2c] sm:$0xf]
    %v36 = vld [vmem:[%s1 + $0x30] sm:$0xf]
    %v37 = vld [vmem:[%s1 + $0x34] sm:$0xf]
    %v38 = vld [vmem:[%s1 + $0x38] sm:$0xf]
    %v39 = vld [vmem:[%s1 + $0x3c] sm:$0xf]
    %v40 = vld [vmem:[%s1 + $0x40] sm:$0xf]
    %v41 = vld [vmem:[%s1 + $0x44] sm:$0xf]
    %v42 = vld [vmem:[%s1 + $0x48] sm:$0xf]
    %v43 = vld [vmem:[%s1 + $0x4c] sm:$0xf]
    %v44 = vld [vmem:[%s1 + $0x50] sm:$0xf]
    %v45 = vld [vmem:[%s1 + $0x54] sm:$0xf]
    %v46 = vld [vmem:[%s1 + $0x58] sm:$0xf]
    %v47 = vld [vmem:[%s1 + $0x5c] sm:$0xf]
    %v48 = vld [vmem:[%s1 + $0x60] sm:$0xf]
    %v49 = vld [vmem:[%s1 + $0x64] sm:$0xf]
    %v50 = vld [vmem:[%s1 + $0x68] sm:$0xf]
    %v51 = vld [vmem:[%s1 + $0x6c] sm:$0xf]
    %v52 = vld [vmem:[%s1 + $0x70] sm:$0xf]
    %v53 = vld [vmem:[%s1 + $0x74] sm:$0xf]
    %v54 = vld [vmem:[%s1 + $0x78] sm:$0xf]
    %v55 = vld [vmem:[%s1 + $0x7c] sm:$0xf]
    %v88 = vunpack.c.l.b16 %v24
    %v89 = vunpack.c.l.b16 %v25
    %v90 = vunpack.c.l.b16 %v26
    %v91 = vunpack.c.l.b16 %v27
    %v92 = vunpack.c.l.b16 %v28
    %v93 = vunpack.c.l.b16 %v29
    %v94 = vunpack.c.l.b16 %v30
    %v95 = vunpack.c.l.b16 %v31
    %v96 = vunpack.c.l.b16 %v32
    %v97 = vunpack.c.l.b16 %v33
    %v98 = vunpack.c.l.b16 %v34
    %v99 = vunpack.c.l.b16 %v35
    %v100 = vunpack.c.l.b16 %v36
    %v101 = vunpack.c.l.b16 %v37
    %v102 = vunpack.c.l.b16 %v38
    %v103 = vunpack.c.l.b16 %v39
    %v104 = vunpack.c.l.b16 %v40
    %v105 = vunpack.c.l.b16 %v41
    %v106 = vunpack.c.l.b16 %v42
    %v107 = vunpack.c.l.b16 %v43
    %v108 = vunpack.c.l.b16 %v44
    %v109 = vunpack.c.l.b16 %v45
    %v110 = vunpack.c.l.b16 %v46
    %v111 = vunpack.c.l.b16 %v47
    %v112 = vunpack.c.l.b16 %v48
    %v113 = vunpack.c.l.b16 %v49
    %v114 = vunpack.c.l.b16 %v50
    %v115 = vunpack.c.l.b16 %v51
    %v116 = vunpack.c.l.b16 %v52
    %v117 = vunpack.c.l.b16 %v53
    %v118 = vunpack.c.l.b16 %v54
    %v119 = vunpack.c.l.b16 %v55
    %v120 = vpack.c.b16 %v89, %v88
    %v121 = vpack.c.b16 %v91, %v90
    %v122 = vpack.c.b16 %v93, %v92
    %v123 = vpack.c.b16 %v95, %v94
    %v124 = vpack.c.b16 %v97, %v96
    %v125 = vpack.c.b16 %v99, %v98
    %v126 = vpack.c.b16 %v101, %v100
    %v127 = vpack.c.b16 %v103, %v102
    %v128 = vpack.c.b16 %v105, %v104
    %v129 = vpack.c.b16 %v107, %v106
    %v130 = vpack.c.b16 %v109, %v108
    %v131 = vpack.c.b16 %v111, %v110
    %v132 = vpack.c.b16 %v113, %v112
    %v133 = vpack.c.b16 %v115, %v114
    %v134 = vpack.c.b16 %v117, %v116
    %v135 = vpack.c.b16 %v119, %v118
    %vm136 = vcmask 64512
    %v138 = vsel %vm136, %v120, 0
    %v141 = vsel %vm136, %v121, 0
    %v144 = vsel %vm136, %v122, 0
    %v147 = vsel %vm136, %v123, 0
    %v150 = vsel %vm136, %v124, 0
    %v153 = vsel %vm136, %v125, 0
    %v156 = vsel %vm136, %v126, 0
    %v159 = vsel %vm136, %v127, 0
    %v162 = vsel %vm136, %v128, 0
    %v165 = vsel %vm136, %v129, 0
    %v168 = vsel %vm136, %v130, 0
    %v171 = vsel %vm136, %v131, 0
    %v174 = vsel %vm136, %v132, 0
    %v177 = vsel %vm136, %v133, 0
    %v180 = vsel %vm136, %v134, 0
    %v183 = vsel %vm136, %v135, 0
    %vm185 = vcmask 1043456
    %v187 = vsel %vm185, %v23, 0
    %189 = vmatprep.subr.bf16.mxu0 0
    %190 = vmatpush1.bf16.msra.mxu0 %v187
    %191 = vmatprep.subr.bf16.mxu0 0
    %192 = vmatpush1.bf16.msra.mxu0 0
    %193 = vmatprep.subr.bf16.mxu0 0
    %194 = vmatpush1.bf16.msra.mxu0 0
    %195 = vmatprep.subr.bf16.mxu0 0
    %196 = vmatpush1.bf16.msra.mxu0 0
    %197 = vmatprep.subr.bf16.mxu0 0
    %198 = vmatpush1.bf16.msra.mxu0 0
    %199 = vmatprep.subr.bf16.mxu0 0
    %200 = vmatpush1.bf16.msra.mxu0 0
    %201 = vmatprep.subr.bf16.mxu0 0
    %202 = vmatpush1.bf16.msra.mxu0 0
    %203 = vmatprep.subr.bf16.mxu0 0
    %204 = vmatpush1.bf16.msra.mxu0 0
    %205 = vmatprep.subr.bf16.mxu0 0
    %206 = vmatpush1.bf16.msra.mxu0 0
    %207 = vmatprep.subr.bf16.mxu0 0
    %208 = vmatpush1.bf16.msra.mxu0 0
    %209 = vmatprep.subr.bf16.mxu0 0
    %210 = vmatpush1.bf16.msra.mxu0 0
    %211 = vmatprep.subr.bf16.mxu0 0
    %212 = vmatpush1.bf16.msra.mxu0 0
    %213 = vmatprep.subr.bf16.mxu0 0
    %214 = vmatpush1.bf16.msra.mxu0 0
    %215 = vmatprep.subr.bf16.mxu0 0
    %216 = vmatpush1.bf16.msra.mxu0 0
    %217 = vmatprep.subr.bf16.mxu0 0
    %218 = vmatpush1.bf16.msra.mxu0 0
    %219 = vmatprep.subr.bf16.mxu0 0
    %220 = vmatpush1.bf16.msra.mxu0 0
    %221 = vmatprep.mubr.bf16.mxu0 0
    %222 = vmatmul.mubr.bf16.gmra.mrb[0].mxu0 %v138
    %v223 = vpop.f32.mrb[0].mxu0
    %v224 = vadd.f32 0.0, %v223
    %v225 = vpop.f32.mrb[0].mxu0
    %v226 = vpop.f32.mrb[0].mxu0
    %v227 = vadd.f32 0.0, %v226
    %v228 = vpop.f32.mrb[0].mxu0
    %229 = vmatprep.mubr.bf16.mxu0 0
    %230 = vmatmul.mubr.bf16.gmra.mrb[0].mxu0 %v141
    %v231 = vpop.f32.mrb[0].mxu0
    %v232 = vadd.f32 0.0, %v231
    %v233 = vpop.f32.mrb[0].mxu0
    %v234 = vpop.f32.mrb[0].mxu0
    %v235 = vadd.f32 0.0, %v234
    %v236 = vpop.f32.mrb[0].mxu0
    %237 = vmatprep.mubr.bf16.mxu0 0
    %238 = vmatmul.mubr.bf16.gmra.mrb[0].mxu0 %v144
    %v239 = vpop.f32.mrb[0].mxu0
    %v240 = vadd.f32 0.0, %v239
    %v241 = vpop.f32.mrb[0].mxu0
    %v242 = vpop.f32.mrb[0].mxu0
    %v243 = vadd.f32 0.0, %v242
    %v244 = vpop.f32.mrb[0].mxu0
    %245 = vmatprep.mubr.bf16.mxu0 0
    %246 = vmatmul.mubr.bf16.gmra.mrb[0].mxu0 %v147
    %v247 = vpop.f32.mrb[0].mxu0
    %v248 = vadd.f32 0.0, %v247
    %v249 = vpop.f32.mrb[0].mxu0
    %v250 = vpop.f32.mrb[0].mxu0
    %v251 = vadd.f32 0.0, %v250
    %v252 = vpop.f32.mrb[0].mxu0
    %253 = vmatprep.mubr.bf16.mxu0 0
    %254 = vmatmul.mubr.bf16.gmra.mrb[0].mxu0 %v150
    %v255 = vpop.f32.mrb[0].mxu0
    %v256 = vadd.f32 0.0, %v255
    %v257 = vpop.f32.mrb[0].mxu0
    %v258 = vpop.f32.mrb[0].mxu0
    %v259 = vadd.f32 0.0, %v258
    %v260 = vpop.f32.mrb[0].mxu0
    %261 = vmatprep.mubr.bf16.mxu0 0
    %262 = vmatmul.mubr.bf16.gmra.mrb[0].mxu0 %v153
    %v263 = vpop.f32.mrb[0].mxu0
    %v264 = vadd.f32 0.0, %v263
    %v265 = vpop.f32.mrb[0].mxu0
    %v266 = vpop.f32.mrb[0].mxu0
    %v267 = vadd.f32 0.0, %v266
    %v268 = vpop.f32.mrb[0].mxu0
    %269 = vmatprep.mubr.bf16.mxu0 0
    %270 = vmatmul.mubr.bf16.gmra.mrb[0].mxu0 %v156
    %v271 = vpop.f32.mrb[0].mxu0
    %v272 = vadd.f32 0.0, %v271
    %v273 = vpop.f32.mrb[0].mxu0
    %v274 = vpop.f32.mrb[0].mxu0
    %v275 = vadd.f32 0.0, %v274
    %v276 = vpop.f32.mrb[0].mxu0
    %277 = vmatprep.mubr.bf16.mxu0 0
    %278 = vmatmul.mubr.bf16.gmra.mrb[0].mxu0 %v159
    %v279 = vpop.f32.mrb[0].mxu0
    %v280 = vadd.f32 0.0, %v279
    %v281 = vpop.f32.mrb[0].mxu0
    %v282 = vpop.f32.mrb[0].mxu0
    %v283 = vadd.f32 0.0, %v282
    %v284 = vpop.f32.mrb[0].mxu0
    %285 = vmatprep.mubr.bf16.mxu0 0
    %286 = vmatmul.mubr.bf16.gmra.mrb[0].mxu0 %v162
    %v287 = vpop.f32.mrb[0].mxu0
    %v288 = vadd.f32 0.0, %v287
    %v289 = vpop.f32.mrb[0].mxu0
    %v290 = vpop.f32.mrb[0].mxu0
    %v291 = vadd.f32 0.0, %v290
    %v292 = vpop.f32.mrb[0].mxu0
    %293 = vmatprep.mubr.bf16.mxu0 0
    %294 = vmatmul.mubr.bf16.gmra.mrb[0].mxu0 %v165
    %v295 = vpop.f32.mrb[0].mxu0
    %v296 = vadd.f32 0.0, %v295
    %v297 = vpop.f32.mrb[0].mxu0
    %v298 = vpop.f32.mrb[0].mxu0
    %v299 = vadd.f32 0.0, %v298
    %v300 = vpop.f32.mrb[0].mxu0
    %301 = vmatprep.mubr.bf16.mxu0 0
    %302 = vmatmul.mubr.bf16.gmra.mrb[0].mxu0 %v168
    %v303 = vpop.f32.mrb[0].mxu0
    %v304 = vadd.f32 0.0, %v303
    %v305 = vpop.f32.mrb[0].mxu0
    %v306 = vpop.f32.mrb[0].mxu0
    %v307 = vadd.f32 0.0, %v306
    %v308 = vpop.f32.mrb[0].mxu0
    %309 = vmatprep.mubr.bf16.mxu0 0
    %310 = vmatmul.mubr.bf16.gmra.mrb[0].mxu0 %v171
    %v311 = vpop.f32.mrb[0].mxu0
    %v312 = vadd.f32 0.0, %v311
    %v313 = vpop.f32.mrb[0].mxu0
    %v314 = vpop.f32.mrb[0].mxu0
    %v315 = vadd.f32 0.0, %v314
    %v316 = vpop.f32.mrb[0].mxu0
    %317 = vmatprep.mubr.bf16.mxu0 0
    %318 = vmatmul.mubr.bf16.gmra.mrb[0].mxu0 %v174
    %v319 = vpop.f32.mrb[0].mxu0
    %v320 = vadd.f32 0.0, %v319
    %v321 = vpop.f32.mrb[0].mxu0
    %v322 = vpop.f32.mrb[0].mxu0
    %v323 = vadd.f32 0.0, %v322
    %v324 = vpop.f32.mrb[0].mxu0
    %325 = vmatprep.mubr.bf16.mxu0 0
    %326 = vmatmul.mubr.bf16.gmra.mrb[0].mxu0 %v177
    %v327 = vpop.f32.mrb[0].mxu0
    %v328 = vadd.f32 0.0, %v327
    %v329 = vpop.f32.mrb[0].mxu0
    %v330 = vpop.f32.mrb[0].mxu0
    %v331 = vadd.f32 0.0, %v330
    %v332 = vpop.f32.mrb[0].mxu0
    %333 = vmatprep.mubr.bf16.mxu0 0
    %334 = vmatmul.mubr.bf16.gmra.mrb[0].mxu0 %v180
    %v335 = vpop.f32.mrb[0].mxu0
    %v336 = vadd.f32 0.0, %v335
    %v337 = vpop.f32.mrb[0].mxu0
    %v338 = vpop.f32.mrb[0].mxu0
    %v339 = vadd.f32 0.0, %v338
    %v340 = vpop.f32.mrb[0].mxu0
    %341 = vmatprep.mubr.bf16.mxu0 0
    %342 = vmatmul.mubr.bf16.gmra.mrb[0].mxu0 %v183
    %v343 = vpop.f32.mrb[0].mxu0
    %v344 = vadd.f32 0.0, %v343
    %v345 = vpop.f32.mrb[0].mxu0
    %v346 = vpop.f32.mrb[0].mxu0
    %v347 = vadd.f32 0.0, %v346
    %v348 = vpop.f32.mrb[0].mxu0
    %349 = vdwg.mxu0
    %v350 = vmul.f32 %v224, 0.01
    %v351 = vmul.f32 %v227, 0.01
    %v352 = vmul.f32 %v232, 0.01
    %v353 = vmul.f32 %v235, 0.01
    %v354 = vmul.f32 %v240, 0.01
    %v355 = vmul.f32 %v243, 0.01
    %v356 = vmul.f32 %v248, 0.01
    %v357 = vmul.f32 %v251, 0.01
    %v358 = vmul.f32 %v256, 0.01
    %v359 = vmul.f32 %v259, 0.01
    %v360 = vmul.f32 %v264, 0.01
    %v361 = vmul.f32 %v267, 0.01
    %v362 = vmul.f32 %v272, 0.01
    %v363 = vmul.f32 %v275, 0.01
    %v364 = vmul.f32 %v280, 0.01
    %v365 = vmul.f32 %v283, 0.01
    %v366 = vmul.f32 %v288, 0.01
    %v367 = vmul.f32 %v291, 0.01
    %v368 = vmul.f32 %v296, 0.01
    %v369 = vmul.f32 %v299, 0.01
    %v370 = vmul.f32 %v304, 0.01
    %v371 = vmul.f32 %v307, 0.01
    %v372 = vmul.f32 %v312, 0.01
    %v373 = vmul.f32 %v315, 0.01
    %v374 = vmul.f32 %v320, 0.01
    %v375 = vmul.f32 %v323, 0.01
    %v376 = vmul.f32 %v328, 0.01
    %v377 = vmul.f32 %v331, 0.01
    %v378 = vmul.f32 %v336, 0.01
    %v379 = vmul.f32 %v339, 0.01
    %v380 = vmul.f32 %v344, 0.01
    %v381 = vmul.f32 %v347, 0.01
    %v382 = vmax.f32 %v224, %v350
    %v383 = vmax.f32 %v227, %v351
    %v384 = vmax.f32 %v232, %v352
    %v385 = vmax.f32 %v235, %v353
    %v386 = vmax.f32 %v240, %v354
    %v387 = vmax.f32 %v243, %v355
    %v388 = vmax.f32 %v248, %v356
    %v389 = vmax.f32 %v251, %v357
    %v390 = vmax.f32 %v256, %v358
    %v391 = vmax.f32 %v259, %v359
    %v392 = vmax.f32 %v264, %v360
    %v393 = vmax.f32 %v267, %v361
    %v394 = vmax.f32 %v272, %v362
    %v395 = vmax.f32 %v275, %v363
    %v396 = vmax.f32 %v280, %v364
    %v397 = vmax.f32 %v283, %v365
    %v398 = vmax.f32 %v288, %v366
    %v399 = vmax.f32 %v291, %v367
    %v400 = vmax.f32 %v296, %v368
    %v401 = vmax.f32 %v299, %v369
    %v402 = vmax.f32 %v304, %v370
    %v403 = vmax.f32 %v307, %v371
    %v404 = vmax.f32 %v312, %v372
    %v405 = vmax.f32 %v315, %v373
    %v406 = vmax.f32 %v320, %v374
    %v407 = vmax.f32 %v323, %v375
    %v408 = vmax.f32 %v328, %v376
    %v409 = vmax.f32 %v331, %v377
    %v410 = vmax.f32 %v336, %v378
    %v411 = vmax.f32 %v339, %v379
    %v412 = vmax.f32 %v344, %v380
    %v413 = vmax.f32 %v347, %v381
    %v414 = vpack.c.bf16 %v383, %v382
    %v415 = vpack.c.bf16 %v385, %v384
    %v416 = vpack.c.bf16 %v387, %v386
    %v417 = vpack.c.bf16 %v389, %v388
    %v418 = vpack.c.bf16 %v391, %v390
    %v419 = vpack.c.bf16 %v393, %v392
    %v420 = vpack.c.bf16 %v395, %v394
    %v421 = vpack.c.bf16 %v397, %v396
    %v422 = vpack.c.bf16 %v399, %v398
    %v423 = vpack.c.bf16 %v401, %v400
    %v424 = vpack.c.bf16 %v403, %v402
    %v425 = vpack.c.bf16 %v405, %v404
    %v426 = vpack.c.bf16 %v407, %v406
    %v427 = vpack.c.bf16 %v409, %v408
    %v428 = vpack.c.bf16 %v411, %v410
    %v429 = vpack.c.bf16 %v413, %v412
    %v430 = vld [vmem:[%s2] sm:$0xff]
    %v431 = vld [vmem:[%s2 + $0x8] sm:$0xff]
    %v432 = vld [vmem:[%s2 + $0x10] sm:$0xff]
    %v433 = vld [vmem:[%s2 + $0x18] sm:$0xff]
    %v434 = vld [vmem:[%s2 + $0x20] sm:$0xff]
    %v435 = vld [vmem:[%s2 + $0x28] sm:$0xff]
    %v436 = vld [vmem:[%s2 + $0x30] sm:$0xff]
    %v437 = vld [vmem:[%s2 + $0x38] sm:$0xff]
    %v438 = vld [vmem:[%s2 + $0x40] sm:$0xff]
    %v439 = vld [vmem:[%s2 + $0x48] sm:$0xff]
    %v440 = vld [vmem:[%s2 + $0x50] sm:$0xff]
    %v441 = vld [vmem:[%s2 + $0x58] sm:$0xff]
    %v442 = vld [vmem:[%s2 + $0x60] sm:$0xff]
    %v443 = vld [vmem:[%s2 + $0x68] sm:$0xff]
    %v444 = vld [vmem:[%s2 + $0x70] sm:$0xff]
    %v445 = vld [vmem:[%s2 + $0x78] sm:$0xff]
    %v446 = vld [vmem:[%s2 + $0x80] sm:$0xff]
    %v447 = vld [vmem:[%s2 + $0x88] sm:$0xff]
    %v448 = vld [vmem:[%s2 + $0x90] sm:$0xff]
    %v449 = vld [vmem:[%s2 + $0x98] sm:$0xff]
    %v450 = vld [vmem:[%s2 + $0xa0] sm:$0xff]
    %v451 = vld [vmem:[%s2 + $0xa8] sm:$0xff]
    %v452 = vld [vmem:[%s2 + $0xb0] sm:$0xff]
    %v453 = vld [vmem:[%s2 + $0xb8] sm:$0xff]
    %v454 = vld [vmem:[%s2 + $0xc0] sm:$0xff]
    %v455 = vld [vmem:[%s2 + $0xc8] sm:$0xff]
    %v456 = vld [vmem:[%s2 + $0xd0] sm:$0xff]
    %v457 = vld [vmem:[%s2 + $0xd8] sm:$0xff]
    %v458 = vld [vmem:[%s2 + $0xe0] sm:$0xff]
    %v459 = vld [vmem:[%s2 + $0xe8] sm:$0xff]
    %v460 = vld [vmem:[%s2 + $0xf0] sm:$0xff]
    %v461 = vld [vmem:[%s2 + $0xf8] sm:$0xff]
    %v462 = vld [vmem:[%s4] sm:$0xff]
    %v463 = vld [vmem:[%s4 + $0x8] sm:$0xff]
    %v464 = vld [vmem:[%s4 + $0x10] sm:$0xff]
    %v465 = vld [vmem:[%s4 + $0x18] sm:$0xff]
    %v466 = vld [vmem:[%s4 + $0x20] sm:$0xff]
    %v467 = vld [vmem:[%s4 + $0x28] sm:$0xff]
    %v468 = vld [vmem:[%s4 + $0x30] sm:$0xff]
    %v469 = vld [vmem:[%s4 + $0x38] sm:$0xff]
    %v470 = vld [vmem:[%s4 + $0x40] sm:$0xff]
    %v471 = vld [vmem:[%s4 + $0x48] sm:$0xff]
    %v472 = vld [vmem:[%s4 + $0x50] sm:$0xff]
    %v473 = vld [vmem:[%s4 + $0x58] sm:$0xff]
    %v474 = vld [vmem:[%s4 + $0x60] sm:$0xff]
    %v475 = vld [vmem:[%s4 + $0x68] sm:$0xff]
    %v476 = vld [vmem:[%s4 + $0x70] sm:$0xff]
    %v477 = vld [vmem:[%s4 + $0x78] sm:$0xff]
    %v478 = vld [vmem:[%s4 + $0x80] sm:$0xff]
    %v479 = vld [vmem:[%s4 + $0x88] sm:$0xff]
    %v480 = vld [vmem:[%s4 + $0x90] sm:$0xff]
    %v481 = vld [vmem:[%s4 + $0x98] sm:$0xff]
    %v482 = vld [vmem:[%s4 + $0xa0] sm:$0xff]
    %v483 = vld [vmem:[%s4 + $0xa8] sm:$0xff]
    %v484 = vld [vmem:[%s4 + $0xb0] sm:$0xff]
    %v485 = vld [vmem:[%s4 + $0xb8] sm:$0xff]
    %v486 = vld [vmem:[%s4 + $0xc0] sm:$0xff]
    %v487 = vld [vmem:[%s4 + $0xc8] sm:$0xff]
    %v488 = vld [vmem:[%s4 + $0xd0] sm:$0xff]
    %v489 = vld [vmem:[%s4 + $0xd8] sm:$0xff]
    %v490 = vld [vmem:[%s4 + $0xe0] sm:$0xff]
    %v491 = vld [vmem:[%s4 + $0xe8] sm:$0xff]
    %v492 = vld [vmem:[%s4 + $0xf0] sm:$0xff]
    %v493 = vld [vmem:[%s4 + $0xf8] sm:$0xff]
    %495 = vset.pattern.permute.xlu0 0
    %496 = vperm.xlu0 %495, %v462
    %v497 = vpop.permute.xlu0 %496
    %500 = vset.pattern.permute.xlu0 0
    %501 = vperm.xlu0 %500, %v463
    %v502 = vpop.permute.xlu0 %501
    %505 = vset.pattern.permute.xlu0 0
    %506 = vperm.xlu0 %505, %v464
    %v507 = vpop.permute.xlu0 %506
    %510 = vset.pattern.permute.xlu0 0
    %511 = vperm.xlu0 %510, %v465
    %v512 = vpop.permute.xlu0 %511
    %515 = vset.pattern.permute.xlu0 0
    %516 = vperm.xlu0 %515, %v466
    %v517 = vpop.permute.xlu0 %516
    %520 = vset.pattern.permute.xlu0 0
    %521 = vperm.xlu0 %520, %v467
    %v522 = vpop.permute.xlu0 %521
    %525 = vset.pattern.permute.xlu0 0
    %526 = vperm.xlu0 %525, %v468
    %v527 = vpop.permute.xlu0 %526
    %530 = vset.pattern.permute.xlu0 0
    %531 = vperm.xlu0 %530, %v469
    %v532 = vpop.permute.xlu0 %531
    %535 = vset.pattern.permute.xlu0 0
    %536 = vperm.xlu0 %535, %v470
    %v537 = vpop.permute.xlu0 %536
    %540 = vset.pattern.permute.xlu0 0
    %541 = vperm.xlu0 %540, %v471
    %v542 = vpop.permute.xlu0 %541
    %545 = vset.pattern.permute.xlu0 0
    %546 = vperm.xlu0 %545, %v472
    %v547 = vpop.permute.xlu0 %546
    %550 = vset.pattern.permute.xlu0 0
    %551 = vperm.xlu0 %550, %v473
    %v552 = vpop.permute.xlu0 %551
    %555 = vset.pattern.permute.xlu0 0
    %556 = vperm.xlu0 %555, %v474
    %v557 = vpop.permute.xlu0 %556
    %560 = vset.pattern.permute.xlu0 0
    %561 = vperm.xlu0 %560, %v475
    %v562 = vpop.permute.xlu0 %561
    %565 = vset.pattern.permute.xlu0 0
    %566 = vperm.xlu0 %565, %v476
    %v567 = vpop.permute.xlu0 %566
    %570 = vset.pattern.permute.xlu0 0
    %571 = vperm.xlu0 %570, %v477
    %v572 = vpop.permute.xlu0 %571
    %575 = vset.pattern.permute.xlu0 0
    %576 = vperm.xlu0 %575, %v478
    %v577 = vpop.permute.xlu0 %576
    %580 = vset.pattern.permute.xlu0 0
    %581 = vperm.xlu0 %580, %v479
    %v582 = vpop.permute.xlu0 %581
    %585 = vset.pattern.permute.xlu0 0
    %586 = vperm.xlu0 %585, %v480
    %v587 = vpop.permute.xlu0 %586
    %590 = vset.pattern.permute.xlu0 0
    %591 = vperm.xlu0 %590, %v481
    %v592 = vpop.permute.xlu0 %591
    %595 = vset.pattern.permute.xlu0 0
    %596 = vperm.xlu0 %595, %v482
    %v597 = vpop.permute.xlu0 %596
    %600 = vset.pattern.permute.xlu0 0
    %601 = vperm.xlu0 %600, %v483
    %v602 = vpop.permute.xlu0 %601
    %605 = vset.pattern.permute.xlu0 0
    %606 = vperm.xlu0 %605, %v484
    %v607 = vpop.permute.xlu0 %606
    %610 = vset.pattern.permute.xlu0 0
    %611 = vperm.xlu0 %610, %v485
    %v612 = vpop.permute.xlu0 %611
    %615 = vset.pattern.permute.xlu0 0
    %616 = vperm.xlu0 %615, %v486
    %v617 = vpop.permute.xlu0 %616
    %620 = vset.pattern.permute.xlu0 0
    %621 = vperm.xlu0 %620, %v487
    %v622 = vpop.permute.xlu0 %621
    %625 = vset.pattern.permute.xlu0 0
    %626 = vperm.xlu0 %625, %v488
    %v627 = vpop.permute.xlu0 %626
    %630 = vset.pattern.permute.xlu0 0
    %631 = vperm.xlu0 %630, %v489
    %v632 = vpop.permute.xlu0 %631
    %635 = vset.pattern.permute.xlu0 0
    %636 = vperm.xlu0 %635, %v490
    %v637 = vpop.permute.xlu0 %636
    %640 = vset.pattern.permute.xlu0 0
    %641 = vperm.xlu0 %640, %v491
    %v642 = vpop.permute.xlu0 %641
    %645 = vset.pattern.permute.xlu0 0
    %646 = vperm.xlu0 %645, %v492
    %v647 = vpop.permute.xlu0 %646
    %650 = vset.pattern.permute.xlu0 0
    %651 = vperm.xlu0 %650, %v493
    %v652 = vpop.permute.xlu0 %651
    %v686 = vunpack.c.l.b16 %v430
    %v687 = vunpack.c.h.b16 %v430
    %v688 = vunpack.c.l.b16 %v431
    %v689 = vunpack.c.h.b16 %v431
    %v690 = vunpack.c.l.b16 %v432
    %v691 = vunpack.c.h.b16 %v432
    %v692 = vunpack.c.l.b16 %v433
    %v693 = vunpack.c.h.b16 %v433
    %v694 = vunpack.c.l.b16 %v434
    %v695 = vunpack.c.h.b16 %v434
    %v696 = vunpack.c.l.b16 %v435
    %v697 = vunpack.c.h.b16 %v435
    %v698 = vunpack.c.l.b16 %v436
    %v699 = vunpack.c.h.b16 %v436
    %v700 = vunpack.c.l.b16 %v437
    %v701 = vunpack.c.h.b16 %v437
    %v702 = vunpack.c.l.b16 %v438
    %v703 = vunpack.c.h.b16 %v438
    %v704 = vunpack.c.l.b16 %v439
    %v705 = vunpack.c.h.b16 %v439
    %v706 = vunpack.c.l.b16 %v440
    %v707 = vunpack.c.h.b16 %v440
    %v708 = vunpack.c.l.b16 %v441
    %v709 = vunpack.c.h.b16 %v441
    %v710 = vunpack.c.l.b16 %v442
    %v711 = vunpack.c.h.b16 %v442
    %v712 = vunpack.c.l.b16 %v443
    %v713 = vunpack.c.h.b16 %v443
    %v714 = vunpack.c.l.b16 %v444
    %v715 = vunpack.c.h.b16 %v444
    %v716 = vunpack.c.l.b16 %v445
    %v717 = vunpack.c.h.b16 %v445
    %v718 = vunpack.c.l.b16 %v446
    %v719 = vunpack.c.h.b16 %v446
    %v720 = vunpack.c.l.b16 %v447
    %v721 = vunpack.c.h.b16 %v447
    %v722 = vunpack.c.l.b16 %v448
    %v723 = vunpack.c.h.b16 %v448
    %v724 = vunpack.c.l.b16 %v449
    %v725 = vunpack.c.h.b16 %v449
    %v726 = vunpack.c.l.b16 %v450
    %v727 = vunpack.c.h.b16 %v450
    %v728 = vunpack.c.l.b16 %v451
    %v729 = vunpack.c.h.b16 %v451
    %v730 = vunpack.c.l.b16 %v452
    %v731 = vunpack.c.h.b16 %v452
    %v732 = vunpack.c.l.b16 %v453
    %v733 = vunpack.c.h.b16 %v453
    %v734 = vunpack.c.l.b16 %v454
    %v735 = vunpack.c.h.b16 %v454
    %v736 = vunpack.c.l.b16 %v455
    %v737 = vunpack.c.h.b16 %v455
    %v738 = vunpack.c.l.b16 %v456
    %v739 = vunpack.c.h.b16 %v456
    %v740 = vunpack.c.l.b16 %v457
    %v741 = vunpack.c.h.b16 %v457
    %v742 = vunpack.c.l.b16 %v458
    %v743 = vunpack.c.h.b16 %v458
    %v744 = vunpack.c.l.b16 %v459
    %v745 = vunpack.c.h.b16 %v459
    %v746 = vunpack.c.l.b16 %v460
    %v747 = vunpack.c.h.b16 %v460
    %v748 = vunpack.c.l.b16 %v461
    %v749 = vunpack.c.h.b16 %v461
    %v750 = vpack.c.b16 %v688, %v686
    %v751 = vpack.c.b16 %v689, %v687
    %v752 = vpack.c.b16 %v692, %v690
    %v753 = vpack.c.b16 %v693, %v691
    %v754 = vpack.c.b16 %v696, %v694
    %v755 = vpack.c.b16 %v697, %v695
    %v756 = vpack.c.b16 %v700, %v698
    %v757 = vpack.c.b16 %v701, %v699
    %v758 = vpack.c.b16 %v704, %v702
    %v759 = vpack.c.b16 %v705, %v703
    %v760 = vpack.c.b16 %v708, %v706
    %v761 = vpack.c.b16 %v709, %v707
    %v762 = vpack.c.b16 %v712, %v710
    %v763 = vpack.c.b16 %v713, %v711
    %v764 = vpack.c.b16 %v716, %v714
    %v765 = vpack.c.b16 %v717, %v715
    %v766 = vpack.c.b16 %v720, %v718
    %v767 = vpack.c.b16 %v721, %v719
    %v768 = vpack.c.b16 %v724, %v722
    %v769 = vpack.c.b16 %v725, %v723
    %v770 = vpack.c.b16 %v728, %v726
    %v771 = vpack.c.b16 %v729, %v727
    %v772 = vpack.c.b16 %v732, %v730
    %v773 = vpack.c.b16 %v733, %v731
    %v774 = vpack.c.b16 %v736, %v734
    %v775 = vpack.c.b16 %v737, %v735
    %v776 = vpack.c.b16 %v740, %v738
    %v777 = vpack.c.b16 %v741, %v739
    %v778 = vpack.c.b16 %v744, %v742
    %v779 = vpack.c.b16 %v745, %v743
    %v780 = vpack.c.b16 %v748, %v746
    %v781 = vpack.c.b16 %v749, %v747
    %814 = vmatprep.subr.bf16.mxu0 0
    %815 = vmatpush1.bf16.msra.mxu0 %v414
    %816 = vmatprep.subr.bf16.mxu0 0
    %817 = vmatpush1.bf16.msra.mxu0 %v415
    %818 = vmatprep.subr.bf16.mxu0 0
    %819 = vmatpush1.bf16.msra.mxu0 %v416
    %820 = vmatprep.subr.bf16.mxu0 0
    %821 = vmatpush1.bf16.msra.mxu0 %v417
    %822 = vmatprep.subr.bf16.mxu0 0
    %823 = vmatpush1.bf16.msra.mxu0 %v418
    %824 = vmatprep.subr.bf16.mxu0 0
    %825 = vmatpush1.bf16.msra.mxu0 %v419
    %826 = vmatprep.subr.bf16.mxu0 0
    %827 = vmatpush1.bf16.msra.mxu0 %v420
    %828 = vmatprep.subr.bf16.mxu0 0
    %829 = vmatpush1.bf16.msra.mxu0 %v421
    %830 = vmatprep.subr.bf16.mxu0 0
    %831 = vmatpush1.bf16.msra.mxu0 %v422
    %832 = vmatprep.subr.bf16.mxu0 0
    %833 = vmatpush1.bf16.msra.mxu0 %v423
    %834 = vmatprep.subr.bf16.mxu0 0
    %835 = vmatpush1.bf16.msra.mxu0 %v424
    %836 = vmatprep.subr.bf16.mxu0 0
    %837 = vmatpush1.bf16.msra.mxu0 %v425
    %838 = vmatprep.subr.bf16.mxu0 0
    %839 = vmatpush1.bf16.msra.mxu0 %v426
    %840 = vmatprep.subr.bf16.mxu0 0
    %841 = vmatpush1.bf16.msra.mxu0 %v427
    %842 = vmatprep.subr.bf16.mxu0 0
    %843 = vmatpush1.bf16.msra.mxu0 %v428
    %844 = vmatprep.subr.bf16.mxu0 0
    %845 = vmatpush1.bf16.msra.mxu0 %v429
    %846 = vmatprep.mubr.bf16.mxu0 %v751
    %847 = vmatmul.mubr.bf16.gmra.mrb[0].mxu0 %v750
    %v848 = vpop.f32.mrb[0].mxu0
    %v849 = vadd.f32 %v497, %v848
    %v850 = vpop.f32.mrb[0].mxu0
    %v851 = vpop.f32.mrb[0].mxu0
    %v852 = vadd.f32 %v502, %v851
    %v853 = vpop.f32.mrb[0].mxu0
    %854 = vmatprep.mubr.bf16.mxu0 %v753
    %855 = vmatmul.mubr.bf16.gmra.mrb[0].mxu0 %v752
    %v856 = vpop.f32.mrb[0].mxu0
    %v857 = vadd.f32 %v507, %v856
    %v858 = vpop.f32.mrb[0].mxu0
    %v859 = vpop.f32.mrb[0].mxu0
    %v860 = vadd.f32 %v512, %v859
    %v861 = vpop.f32.mrb[0].mxu0
    %862 = vmatprep.mubr.bf16.mxu0 %v755
    %863 = vmatmul.mubr.bf16.gmra.mrb[0].mxu0 %v754
    %v864 = vpop.f32.mrb[0].mxu0
    %v865 = vadd.f32 %v517, %v864
    %v866 = vpop.f32.mrb[0].mxu0
    %v867 = vpop.f32.mrb[0].mxu0
    %v868 = vadd.f32 %v522, %v867
    %v869 = vpop.f32.mrb[0].mxu0
    %870 = vmatprep.mubr.bf16.mxu0 %v757
    %871 = vmatmul.mubr.bf16.gmra.mrb[0].mxu0 %v756
    %v872 = vpop.f32.mrb[0].mxu0
    %v873 = vadd.f32 %v527, %v872
    %v874 = vpop.f32.mrb[0].mxu0
    %v875 = vpop.f32.mrb[0].mxu0
    %v876 = vadd.f32 %v532, %v875
    %v877 = vpop.f32.mrb[0].mxu0
    %878 = vmatprep.mubr.bf16.mxu0 %v759
    %879 = vmatmul.mubr.bf16.gmra.mrb[0].mxu0 %v758
    %v880 = vpop.f32.mrb[0].mxu0
    %v881 = vadd.f32 %v537, %v880
    %v882 = vpop.f32.mrb[0].mxu0
    %v883 = vpop.f32.mrb[0].mxu0
    %v884 = vadd.f32 %v542, %v883
    %v885 = vpop.f32.mrb[0].mxu0
    %886 = vmatprep.mubr.bf16.mxu0 %v761
    %887 = vmatmul.mubr.bf16.gmra.mrb[0].mxu0 %v760
    %v888 = vpop.f32.mrb[0].mxu0
    %v889 = vadd.f32 %v547, %v888
    %v890 = vpop.f32.mrb[0].mxu0
    %v891 = vpop.f32.mrb[0].mxu0
    %v892 = vadd.f32 %v552, %v891
    %v893 = vpop.f32.mrb[0].mxu0
    %894 = vmatprep.mubr.bf16.mxu0 %v763
    %895 = vmatmul.mubr.bf16.gmra.mrb[0].mxu0 %v762
    %v896 = vpop.f32.mrb[0].mxu0
    %v897 = vadd.f32 %v557, %v896
    %v898 = vpop.f32.mrb[0].mxu0
    %v899 = vpop.f32.mrb[0].mxu0
    %v900 = vadd.f32 %v562, %v899
    %v901 = vpop.f32.mrb[0].mxu0
    %902 = vmatprep.mubr.bf16.mxu0 %v765
    %903 = vmatmul.mubr.bf16.gmra.mrb[0].mxu0 %v764
    %v904 = vpop.f32.mrb[0].mxu0
    %v905 = vadd.f32 %v567, %v904
    %v906 = vpop.f32.mrb[0].mxu0
    %v907 = vpop.f32.mrb[0].mxu0
    %v908 = vadd.f32 %v572, %v907
    %v909 = vpop.f32.mrb[0].mxu0
    %910 = vmatprep.mubr.bf16.mxu0 %v767
    %911 = vmatmul.mubr.bf16.gmra.mrb[0].mxu0 %v766
    %v912 = vpop.f32.mrb[0].mxu0
    %v913 = vadd.f32 %v577, %v912
    %v914 = vpop.f32.mrb[0].mxu0
    %v915 = vpop.f32.mrb[0].mxu0
    %v916 = vadd.f32 %v582, %v915
    %v917 = vpop.f32.mrb[0].mxu0
    %918 = vmatprep.mubr.bf16.mxu0 %v769
    %919 = vmatmul.mubr.bf16.gmra.mrb[0].mxu0 %v768
    %v920 = vpop.f32.mrb[0].mxu0
    %v921 = vadd.f32 %v587, %v920
    %v922 = vpop.f32.mrb[0].mxu0
    %v923 = vpop.f32.mrb[0].mxu0
    %v924 = vadd.f32 %v592, %v923
    %v925 = vpop.f32.mrb[0].mxu0
    %926 = vmatprep.mubr.bf16.mxu0 %v771
    %927 = vmatmul.mubr.bf16.gmra.mrb[0].mxu0 %v770
    %v928 = vpop.f32.mrb[0].mxu0
    %v929 = vadd.f32 %v597, %v928
    %v930 = vpop.f32.mrb[0].mxu0
    %v931 = vpop.f32.mrb[0].mxu0
    %v932 = vadd.f32 %v602, %v931
    %v933 = vpop.f32.mrb[0].mxu0
    %934 = vmatprep.mubr.bf16.mxu0 %v773
    %935 = vmatmul.mubr.bf16.gmra.mrb[0].mxu0 %v772
    %v936 = vpop.f32.mrb[0].mxu0
    %v937 = vadd.f32 %v607, %v936
    %v938 = vpop.f32.mrb[0].mxu0
    %v939 = vpop.f32.mrb[0].mxu0
    %v940 = vadd.f32 %v612, %v939
    %v941 = vpop.f32.mrb[0].mxu0
    %942 = vmatprep.mubr.bf16.mxu0 %v775
    %943 = vmatmul.mubr.bf16.gmra.mrb[0].mxu0 %v774
    %v944 = vpop.f32.mrb[0].mxu0
    %v945 = vadd.f32 %v617, %v944
    %v946 = vpop.f32.mrb[0].mxu0
    %v947 = vpop.f32.mrb[0].mxu0
    %v948 = vadd.f32 %v622, %v947
    %v949 = vpop.f32.mrb[0].mxu0
    %950 = vmatprep.mubr.bf16.mxu0 %v777
    %951 = vmatmul.mubr.bf16.gmra.mrb[0].mxu0 %v776
    %v952 = vpop.f32.mrb[0].mxu0
    %v953 = vadd.f32 %v627, %v952
    %v954 = vpop.f32.mrb[0].mxu0
    %v955 = vpop.f32.mrb[0].mxu0
    %v956 = vadd.f32 %v632, %v955
    %v957 = vpop.f32.mrb[0].mxu0
    %958 = vmatprep.mubr.bf16.mxu0 %v779
    %959 = vmatmul.mubr.bf16.gmra.mrb[0].mxu0 %v778
    %v960 = vpop.f32.mrb[0].mxu0
    %v961 = vadd.f32 %v637, %v960
    %v962 = vpop.f32.mrb[0].mxu0
    %v963 = vpop.f32.mrb[0].mxu0
    %v964 = vadd.f32 %v642, %v963
    %v965 = vpop.f32.mrb[0].mxu0
    %966 = vmatprep.mubr.bf16.mxu0 %v781
    %967 = vmatmul.mubr.bf16.gmra.mrb[0].mxu0 %v780
    %v968 = vpop.f32.mrb[0].mxu0
    %v969 = vadd.f32 %v647, %v968
    %v970 = vpop.f32.mrb[0].mxu0
    %v971 = vpop.f32.mrb[0].mxu0
    %v972 = vadd.f32 %v652, %v971
    %v973 = vpop.f32.mrb[0].mxu0
    %974 = vdwg.mxu0
    %v975 = vmul.f32 %v849, 0.01
    %v976 = vmul.f32 %v852, 0.01
    %v977 = vmul.f32 %v857, 0.01
    %v978 = vmul.f32 %v860, 0.01
    %v979 = vmul.f32 %v865, 0.01
    %v980 = vmul.f32 %v868, 0.01
    %v981 = vmul.f32 %v873, 0.01
    %v982 = vmul.f32 %v876, 0.01
    %v983 = vmul.f32 %v881, 0.01
    %v984 = vmul.f32 %v884, 0.01
    %v985 = vmul.f32 %v889, 0.01
    %v986 = vmul.f32 %v892, 0.01
    %v987 = vmul.f32 %v897, 0.01
    %v988 = vmul.f32 %v900, 0.01
    %v989 = vmul.f32 %v905, 0.01
    %v990 = vmul.f32 %v908, 0.01
    %v991 = vmul.f32 %v913, 0.01
    %v992 = vmul.f32 %v916, 0.01
    %v993 = vmul.f32 %v921, 0.01
    %v994 = vmul.f32 %v924, 0.01
    %v995 = vmul.f32 %v929, 0.01
    %v996 = vmul.f32 %v932, 0.01
    %v997 = vmul.f32 %v937, 0.01
    %v998 = vmul.f32 %v940, 0.01
    %v999 = vmul.f32 %v945, 0.01
    %v1000 = vmul.f32 %v948, 0.01
    %v1001 = vmul.f32 %v953, 0.01
    %v1002 = vmul.f32 %v956, 0.01
    %v1003 = vmul.f32 %v961, 0.01
    %v1004 = vmul.f32 %v964, 0.01
    %v1005 = vmul.f32 %v969, 0.01
    %v1006 = vmul.f32 %v972, 0.01
    %v1007 = vmax.f32 %v849, %v975
    %v1008 = vmax.f32 %v852, %v976
    %v1009 = vmax.f32 %v857, %v977
    %v1010 = vmax.f32 %v860, %v978
    %v1011 = vmax.f32 %v865, %v979
    %v1012 = vmax.f32 %v868, %v980
    %v1013 = vmax.f32 %v873, %v981
    %v1014 = vmax.f32 %v876, %v982
    %v1015 = vmax.f32 %v881, %v983
    %v1016 = vmax.f32 %v884, %v984
    %v1017 = vmax.f32 %v889, %v985
    %v1018 = vmax.f32 %v892, %v986
    %v1019 = vmax.f32 %v897, %v987
    %v1020 = vmax.f32 %v900, %v988
    %v1021 = vmax.f32 %v905, %v989
    %v1022 = vmax.f32 %v908, %v990
    %v1023 = vmax.f32 %v913, %v991
    %v1024 = vmax.f32 %v916, %v992
    %v1025 = vmax.f32 %v921, %v993
    %v1026 = vmax.f32 %v924, %v994
    %v1027 = vmax.f32 %v929, %v995
    %v1028 = vmax.f32 %v932, %v996
    %v1029 = vmax.f32 %v937, %v997
    %v1030 = vmax.f32 %v940, %v998
    %v1031 = vmax.f32 %v945, %v999
    %v1032 = vmax.f32 %v948, %v1000
    %v1033 = vmax.f32 %v953, %v1001
    %v1034 = vmax.f32 %v956, %v1002
    %v1035 = vmax.f32 %v961, %v1003
    %v1036 = vmax.f32 %v964, %v1004
    %v1037 = vmax.f32 %v969, %v1005
    %v1038 = vmax.f32 %v972, %v1006
    %v1039 = vpack.c.bf16 %v1008, %v1007
    %v1040 = vpack.c.bf16 %v1010, %v1009
    %v1041 = vpack.c.bf16 %v1012, %v1011
    %v1042 = vpack.c.bf16 %v1014, %v1013
    %v1043 = vpack.c.bf16 %v1016, %v1015
    %v1044 = vpack.c.bf16 %v1018, %v1017
    %v1045 = vpack.c.bf16 %v1020, %v1019
    %v1046 = vpack.c.bf16 %v1022, %v1021
    %v1047 = vpack.c.bf16 %v1024, %v1023
    %v1048 = vpack.c.bf16 %v1026, %v1025
    %v1049 = vpack.c.bf16 %v1028, %v1027
    %v1050 = vpack.c.bf16 %v1030, %v1029
    %v1051 = vpack.c.bf16 %v1032, %v1031
    %v1052 = vpack.c.bf16 %v1034, %v1033
    %v1053 = vpack.c.bf16 %v1036, %v1035
    %v1054 = vpack.c.bf16 %v1038, %v1037
    %v1055 = vld [vmem:[%s3] sm:$0xff]
    %v1056 = vld [vmem:[%s4] sm:$0xff]
    %1058 = vset.pattern.permute.xlu0 1
    %1059 = vperm.xlu0 %1058, %v1056
    %v1060 = vpop.permute.xlu0 %1059
    %v1063 = vunpack.c.l.b16 %v1055
    %v1064 = vunpack.c.h.b16 %v1055
    %v1065 = vpack.c.b16 %v1063, %v1063
    %v1066 = vpack.c.b16 %v1064, %v1064
    %1069 = vmatprep.subr.bf16.mxu0 0
    %1070 = vmatpush1.bf16.msra.mxu0 %v1039
    %1071 = vmatprep.subr.bf16.mxu0 0
    %1072 = vmatpush1.bf16.msra.mxu0 %v1040
    %1073 = vmatprep.subr.bf16.mxu0 0
    %1074 = vmatpush1.bf16.msra.mxu0 %v1041
    %1075 = vmatprep.subr.bf16.mxu0 0
    %1076 = vmatpush1.bf16.msra.mxu0 %v1042
    %1077 = vmatprep.subr.bf16.mxu0 0
    %1078 = vmatpush1.bf16.msra.mxu0 %v1043
    %1079 = vmatprep.subr.bf16.mxu0 0
    %1080 = vmatpush1.bf16.msra.mxu0 %v1044
    %1081 = vmatprep.subr.bf16.mxu0 0
    %1082 = vmatpush1.bf16.msra.mxu0 %v1045
    %1083 = vmatprep.subr.bf16.mxu0 0
    %1084 = vmatpush1.bf16.msra.mxu0 %v1046
    %1085 = vmatprep.subr.bf16.mxu0 0
    %1086 = vmatpush1.bf16.msra.mxu0 %v1047
    %1087 = vmatprep.subr.bf16.mxu0 0
    %1088 = vmatpush1.bf16.msra.mxu0 %v1048
    %1089 = vmatprep.subr.bf16.mxu0 0
    %1090 = vmatpush1.bf16.msra.mxu0 %v1049
    %1091 = vmatprep.subr.bf16.mxu0 0
    %1092 = vmatpush1.bf16.msra.mxu0 %v1050
    %1093 = vmatprep.subr.bf16.mxu0 0
    %1094 = vmatpush1.bf16.msra.mxu0 %v1051
    %1095 = vmatprep.subr.bf16.mxu0 0
    %1096 = vmatpush1.bf16.msra.mxu0 %v1052
    %1097 = vmatprep.subr.bf16.mxu0 0
    %1098 = vmatpush1.bf16.msra.mxu0 %v1053
    %1099 = vmatprep.subr.bf16.mxu0 0
    %1100 = vmatpush1.bf16.msra.mxu0 %v1054
    %1101 = vmatprep.mubr.bf16.mxu0 %v1066
    %1102 = vmatmul.mubr.bf16.gmra.mrb[0].mxu0 %v1065
    %v1103 = vpop.f32.mrb[0].mxu0
    %v1104 = vadd.f32 %v1060, %v1103
    %v1105 = vpop.f32.mrb[0].mxu0
    %v1106 = vpop.f32.mrb[0].mxu0
    %v1107 = vpop.f32.mrb[0].mxu0
    %1108 = vdwg.mxu0
    %1109 = vst [vmem:[#allocation2] sm:$0xff] %v1104
    // Predicated region
    $region22: #{tpu_custom_call.1} parent=1 // pred_check
      _
    $region23: #{tpu_custom_call.1} parent=1 // pred_check_branch
      %1111 = sbr.rel (0) target = $region25
    $region24: #{tpu_custom_call.1} parent=1 // pred_region
      %s1113 = ssub.s32 128, 128
      %1114 = vsyncadd [#allocation3], %s1113
      %s1116 = sshll.u32 [#allocation2], 4
      %s1117 = int_to_ptr.vmem [resolvable:$true] %s1116
      %1119 = dma.vmem_to_hbm [thread:$0]  %s1117, 128, %s5, [#allocation3]
    $region25: #{tpu_custom_call.1} parent=1 // pred_fallthru
      _
    // Predicated region
    $region26: #{tpu_custom_call.1} parent=1 // pred_check
      _
    $region27: #{tpu_custom_call.1} parent=1 // pred_check_branch
      %1121 = sbr.rel (0) target = $region29
    $region28: #{tpu_custom_call.1} parent=1 // pred_region
      %1122 = dma.done [#allocation3], 128
    $region29: #{tpu_custom_call.1} parent=1 // pred_fallthru
      _
    %1123 = vsyncpa [#allocation3], 1

</llo_original>
